<compile_context>
chip_gen: v6e
topology: v6e:2x2x1
jax: 0.10.0
libtpu: 0.0.40
codegen_flags: <defaults>
</compile_context>

<pallas_src>
import functools

import jax
import jax.numpy as jnp
from jax import lax
from jax.experimental import pallas as pl
from jax.experimental.pallas import tpu as pltpu


def _make_tensordot_kernel(metric: str, inv_k: float, use_scratch: bool):
    """Tiled matmul kernel; the metric transform is fused into the finalize."""

    def kernel_scratch(q_ref, t_ref, o_ref, acc_ref):
        @pl.when(pl.program_id(2) == 0)
        def _init():
            acc_ref[...] = jnp.zeros_like(acc_ref)

        # q_ref: (tm, tk), t_ref: (tn, tk) -> contract last dims: (tm, tn).
        acc_ref[...] += lax.dot_general(
            q_ref[...], t_ref[...],
            dimension_numbers=(((1,), (1,)), ((), ())),
            preferred_element_type=jnp.float32,
        )

        @pl.when(pl.program_id(2) == pl.num_programs(2) - 1)
        def _fin():
            sim = acc_ref[...]
            if metric == "euclidean":
                sim = 1.0 - 2.0 * sim
            elif metric == "hamming":
                sim = sim * inv_k
            o_ref[...] = sim.astype(o_ref.dtype)

    def kernel_direct(q_ref, t_ref, o_ref):
        # Output is f32 and resident across the k axis -> accumulate in place.
        @pl.when(pl.program_id(2) == 0)
        def _init():
            o_ref[...] = jnp.zeros_like(o_ref)

        o_ref[...] += lax.dot_general(
            q_ref[...], t_ref[...],
            dimension_numbers=(((1,), (1,)), ((), ())),
            preferred_element_type=jnp.float32,
        )

        if metric != "cosine":
            @pl.when(pl.program_id(2) == pl.num_programs(2) - 1)
            def _fin():
                if metric == "euclidean":
                    o_ref[...] = 1.0 - 2.0 * o_ref[...]
                else:  # hamming
                    o_ref[...] = o_ref[...] * inv_k

    return kernel_scratch if use_scratch else kernel_direct


@functools.partial(
    jax.jit, static_argnames=("metric", "tm", "tn", "tk", "compute_dtype")
)
def tensor_dot(query, target, *, metric="cosine", tm=256, tn=256, tk=512,
               compute_dtype=jnp.bfloat16):
    """Pallas implementation of TensorDot.forward for pattern 'iak,jbk->iabj'."""
    if metric not in ("cosine", "euclidean", "hamming"):
        raise ValueError(f"unknown metric: {metric}")

    I, A, K = query.shape
    J, B, K2 = target.shape
    assert K == K2, "contraction dims must match"

    out_dtype = query.dtype
    M = I * A
    N = J * B

    # Flatten query batch axes; swap only target's batch axes (K stays on the
    # lane axis) so the kernel's N axis is (B, J)-ordered and the output
    # reshapes directly to (I, A, B, J) with no trailing transpose.
    q2d = query.reshape(M, K)                             # (M, K)
    t2d = jnp.transpose(target, (1, 0, 2)).reshape(N, K)  # (N, K)

    if compute_dtype is not None:
        q2d = q2d.astype(compute_dtype)
        t2d = t2d.astype(compute_dtype)

    tm = min(tm, M)
    tn = min(tn, N)
    tk = min(tk, K)

    # v7x has 2 TensorCores: keep >= 2 parallel grid blocks when shapes allow.
    if (pl.cdiv(M, tm) * pl.cdiv(N, tn)) < 2 and tn >= 256 and N % (tn // 2) == 0:
        tn //= 2

    # Zero-pad to tile multiples (zeros do not change the contraction).
    Mp = pl.cdiv(M, tm) * tm
    Np = pl.cdiv(N, tn) * tn
    Kp = pl.cdiv(K, tk) * tk
    if (Mp, Kp) != (M, K):
        q2d = jnp.pad(q2d, ((0, Mp - M), (0, Kp - K)))
    if (Np, Kp) != (N, K):
        t2d = jnp.pad(t2d, ((0, Np - N), (0, Kp - K)))

    use_scratch = out_dtype != jnp.float32
    kernel = _make_tensordot_kernel(metric, 1.0 / float(K), use_scratch)
    scratch_shapes = [pltpu.VMEM((tm, tn), jnp.float32)] if use_scratch else []

    s = pl.pallas_call(
        kernel,
        out_shape=jax.ShapeDtypeStruct((Mp, Np), out_dtype),
        grid_spec=pltpu.PrefetchScalarGridSpec(
            num_scalar_prefetch=0,
            grid=(Mp // tm, Np // tn, Kp // tk),
            in_specs=[
                pl.BlockSpec((tm, tk), lambda i, j, k: (i, k)),  # Q tile
                pl.BlockSpec((tn, tk), lambda i, j, k: (j, k)),  # T tile (row-major, no transpose)
            ],
            out_specs=pl.BlockSpec((tm, tn), lambda i, j, k: (i, j)),
            scratch_shapes=scratch_shapes,
        ),
        compiler_params=pltpu.CompilerParams(
            dimension_semantics=("parallel", "parallel", "arbitrary"),
            vmem_limit_bytes=48 * 1024 * 1024,  # safe on v5e/v6e/v7x
        ),
    )(q2d, t2d)

    if (Mp, Np) != (M, N):
        s = s[:M, :N]

    # S[ia, bj] -> (I, A, B, J), pure reshape (no transpose).
    return s.reshape(I, A, B, J)


if __name__ == "__main__":
    key = jax.random.PRNGKey(0)
    kq, kt = jax.random.split(key)

    # query: (I, A, K), target: (J, B, K)
    I, A, K = 2, 64, 256
    J, B = 2, 64
    query = jax.random.normal(kq, (I, A, K), dtype=jnp.float32)
    target = jax.random.normal(kt, (J, B, K), dtype=jnp.float32)

    out = tensor_dot(query, target, metric="cosine")
    out = jax.block_until_ready(out)
    assert out.shape == (I, A, B, J)

    # Reference at the same (bf16-input, f32-accumulate) precision.
    qr = query.astype(jnp.bfloat16).astype(jnp.float32)
    tr = target.astype(jnp.bfloat16).astype(jnp.float32)
    ref = jnp.einsum("iak,jbk->iabj", qr, tr)
    assert jnp.allclose(out, ref, atol=1e-2, rtol=1e-2)

    out_e = jax.block_until_ready(tensor_dot(query, target, metric="euclidean"))
    assert jnp.allclose(out_e, 1.0 - 2.0 * ref, atol=1e-2, rtol=1e-2)

    out_h = jax.block_until_ready(tensor_dot(query, target, metric="hamming"))
    assert jnp.allclose(out_h, ref / K, atol=1e-2, rtol=1e-2)

    print("KERNEL_OK")
</pallas_src>

<mosaic_0001>
module attributes {stable_mosaic.version = 11 : i64} {
  func.func @kernel_direct(%arg0: i32, %arg1: i32, %arg2: i32, %arg3: memref<128x256xbf16, #tpu.memory_space<vmem>>, %arg4: memref<128x256xbf16, #tpu.memory_space<vmem>>, %arg5: memref<128x128xf32, #tpu.memory_space<vmem>>) attributes {dimension_semantics = [#tpu.dimension_semantics<parallel>, #tpu.dimension_semantics<parallel>, #tpu.dimension_semantics<arbitrary>], iteration_bounds = array<i64: 1, 1, 1>, scalar_prefetch = 0 : i64, scratch_operands = 0 : i64, tpu.core_type = #tpu.core_type<tc>, window_params = [{transform_indices = @transform_0, window_bounds = array<i64: 128, 256>}, {transform_indices = @transform_1, window_bounds = array<i64: 128, 256>}, {transform_indices = @transform_2, window_bounds = array<i64: 128, 128>}]} {
    %c0_i32 = arith.constant 0 : i32
    %0 = arith.cmpi eq, %arg2, %c0_i32 : i32
    %1 = arith.extui %0 : i1 to i32
    %c0_i32_0 = arith.constant 0 : i32
    %2 = arith.cmpi ne, %1, %c0_i32_0 : i32
    scf.if %2 {
      %cst_8 = arith.constant 0.000000e+00 : f32
      %9 = vector.broadcast %cst_8 : f32 to vector<128x128xf32>
      %c0_9 = arith.constant 0 : index
      %c0_10 = arith.constant 0 : index
      %10 = vector.load %arg5[%c0_9, %c0_10] : memref<128x128xf32, #tpu.memory_space<vmem>>, vector<128x128xf32>
      tpu.vector_store %arg5[%c0_9, %c0_10], %9 {strides = array<i32>} : memref<128x128xf32, #tpu.memory_space<vmem>>, vector<128x128xf32>,
    } else {
    }
    %c0 = arith.constant 0 : index
    %c0_1 = arith.constant 0 : index
    %3 = vector.load %arg5[%c0, %c0_1] : memref<128x128xf32, #tpu.memory_space<vmem>>, vector<128x128xf32>
    %c0_2 = arith.constant 0 : index
    %c0_3 = arith.constant 0 : index
    %4 = vector.load %arg3[%c0_2, %c0_3] : memref<128x256xbf16, #tpu.memory_space<vmem>>, vector<128x256xbf16>
    %c0_4 = arith.constant 0 : index
    %c0_5 = arith.constant 0 : index
    %5 = vector.load %arg4[%c0_4, %c0_5] : memref<128x256xbf16, #tpu.memory_space<vmem>>, vector<128x256xbf16>
    %cst = arith.constant dense<0.000000e+00> : vector<128x128xf32>
    %6 = tpu.matmul %4, %5, %cst {dimension_numbers = #tpu.dot_dimension_numbers<[1], [1], [0], [0], [0, 0, 1, 0], [], []>} : vector<128x256xbf16>, vector<128x256xbf16>, vector<128x128xf32> -> vector<128x128xf32>
    %7 = arith.addf %3, %6 : vector<128x128xf32>
    %c0_6 = arith.constant 0 : index
    %c0_7 = arith.constant 0 : index
    %8 = vector.load %arg5[%c0_6, %c0_7] : memref<128x128xf32, #tpu.memory_space<vmem>>, vector<128x128xf32>
    tpu.vector_store %arg5[%c0_6, %c0_7], %7 {strides = array<i32>} : memref<128x128xf32, #tpu.memory_space<vmem>>, vector<128x128xf32>,
    return
  }
  func.func @transform_0(%arg0: i32, %arg1: i32, %arg2: i32) -> (i32, i32) {
    %c0_i32 = arith.constant 0 : i32
    return %arg0, %arg2 : i32, i32
  }
  func.func @transform_1(%arg0: i32, %arg1: i32, %arg2: i32) -> (i32, i32) {
    %c0_i32 = arith.constant 0 : i32
    return %arg1, %arg2 : i32, i32
  }
  func.func @transform_2(%arg0: i32, %arg1: i32, %arg2: i32) -> (i32, i32) {
    %c0_i32 = arith.constant 0 : i32
    return %arg0, %arg1 : i32, i32
  }
}

</mosaic_0001>

<llo_original>
// kernel: tensor_dot.1
$region0: #{tensor_dot.1}
  #allocation0 [shape = 'u32[]', space=smem, size = 0x4, offset = 0x4, fixed_abs, tag = 'smem constant byte address 0x4 - core index']
  #allocation1 [shape = 'u32[144,128]{1,0:T(1,128)}', space=vmem, size = 0x12000, scoped, tag = 'internal scratch']
  %s0 = inlined_call_operand.vmem [shape: bf16[128,256], index: 0, kind: input, shape index: {}]
  %s1 = inlined_call_operand.vmem [shape: bf16[128,256], index: 1, kind: input, shape index: {}]
  %s2 = inlined_call_operand.vmem [shape: f32[128,128], index: 2, kind: output, shape index: {}]
  %s3 = sld [smem:[#allocation0]]
  $region22: #{tensor_dot.1} parent=0
    _
  %s5 = ssub.s32 1, %s3
  %s6 = scalar_select 0, %s5, %s3
  // Predicated region
  $region2: #{tensor_dot.1} parent=0 // pred_check
    _
  $region3: #{tensor_dot.1} parent=0 // pred_check_branch
    %8 = sbr.rel (0) target = $region5
  $region4: #{tensor_dot.1} parent=0 // pred_region
    _
  $region5: #{tensor_dot.1} parent=0 // pred_fallthru
    _
  // Predicated region
  $region6: #{tensor_dot.1} parent=0 // pred_check
    _
  $region7: #{tensor_dot.1} parent=0 // pred_check_branch
    %10 = sbr.rel (0) target = $region9
  $region8: #{tensor_dot.1} parent=0 // pred_region
    _
  $region9: #{tensor_dot.1} parent=0 // pred_fallthru
    _
  %p12 = scmp.eq.s32.totalorder 0, 0
  // Predicated region
  $region10: #{tensor_dot.1} parent=0 // pred_check
    %p13 = pneg %p12
  $region11: #{tensor_dot.1} parent=0 // pred_check_branch
    %15 = sbr.rel (%p13) target = $region13
  $region12: #{tensor_dot.1} parent=0 // pred_region
    %16 = vst [vmem:[%s2] sm:$0xff] 0.0
    %17 = vst [vmem:[%s2 + $0x8] sm:$0xff] 0.0
    %18 = vst [vmem:[%s2 + $0x10] sm:$0xff] 0.0
    %19 = vst [vmem:[%s2 + $0x18] sm:$0xff] 0.0
    %20 = vst [vmem:[%s2 + $0x20] sm:$0xff] 0.0
    %21 = vst [vmem:[%s2 + $0x28] sm:$0xff] 0.0
    %22 = vst [vmem:[%s2 + $0x30] sm:$0xff] 0.0
    %23 = vst [vmem:[%s2 + $0x38] sm:$0xff] 0.0
    %24 = vst [vmem:[%s2 + $0x40] sm:$0xff] 0.0
    %25 = vst [vmem:[%s2 + $0x48] sm:$0xff] 0.0
    %26 = vst [vmem:[%s2 + $0x50] sm:$0xff] 0.0
    %27 = vst [vmem:[%s2 + $0x58] sm:$0xff] 0.0
    %28 = vst [vmem:[%s2 + $0x60] sm:$0xff] 0.0
    %29 = vst [vmem:[%s2 + $0x68] sm:$0xff] 0.0
    %30 = vst [vmem:[%s2 + $0x70] sm:$0xff] 0.0
    %31 = vst [vmem:[%s2 + $0x78] sm:$0xff] 0.0
  $region13: #{tensor_dot.1} parent=0 // pred_fallthru
    _
  %v32 = vld [vmem:[%s2] sm:$0xff]
  %v33 = vld [vmem:[%s2 + $0x8] sm:$0xff]
  %v34 = vld [vmem:[%s2 + $0x10] sm:$0xff]
  %v35 = vld [vmem:[%s2 + $0x18] sm:$0xff]
  %v36 = vld [vmem:[%s2 + $0x20] sm:$0xff]
  %v37 = vld [vmem:[%s2 + $0x28] sm:$0xff]
  %v38 = vld [vmem:[%s2 + $0x30] sm:$0xff]
  %v39 = vld [vmem:[%s2 + $0x38] sm:$0xff]
  %v40 = vld [vmem:[%s2 + $0x40] sm:$0xff]
  %v41 = vld [vmem:[%s2 + $0x48] sm:$0xff]
  %v42 = vld [vmem:[%s2 + $0x50] sm:$0xff]
  %v43 = vld [vmem:[%s2 + $0x58] sm:$0xff]
  %v44 = vld [vmem:[%s2 + $0x60] sm:$0xff]
  %v45 = vld [vmem:[%s2 + $0x68] sm:$0xff]
  %v46 = vld [vmem:[%s2 + $0x70] sm:$0xff]
  %v47 = vld [vmem:[%s2 + $0x78] sm:$0xff]
  %v48 = vld [vmem:[%s0] sm:$0xff]
  %v49 = vld [vmem:[%s0 + $0x8] sm:$0xff]
  %v50 = vld [vmem:[%s0 + $0x10] sm:$0xff]
  %v51 = vld [vmem:[%s0 + $0x18] sm:$0xff]
  %v52 = vld [vmem:[%s0 + $0x20] sm:$0xff]
  %v53 = vld [vmem:[%s0 + $0x28] sm:$0xff]
  %v54 = vld [vmem:[%s0 + $0x30] sm:$0xff]
  %v55 = vld [vmem:[%s0 + $0x38] sm:$0xff]
  %v56 = vld [vmem:[%s0 + $0x40] sm:$0xff]
  %v57 = vld [vmem:[%s0 + $0x48] sm:$0xff]
  %v58 = vld [vmem:[%s0 + $0x50] sm:$0xff]
  %v59 = vld [vmem:[%s0 + $0x58] sm:$0xff]
  %v60 = vld [vmem:[%s0 + $0x60] sm:$0xff]
  %v61 = vld [vmem:[%s0 + $0x68] sm:$0xff]
  %v62 = vld [vmem:[%s0 + $0x70] sm:$0xff]
  %v63 = vld [vmem:[%s0 + $0x78] sm:$0xff]
  %v64 = vld [vmem:[%s1] sm:$0xff]
  %v65 = vld [vmem:[%s1 + $0x8] sm:$0xff]
  %v66 = vld [vmem:[%s1 + $0x10] sm:$0xff]
  %v67 = vld [vmem:[%s1 + $0x18] sm:$0xff]
  %v68 = vld [vmem:[%s1 + $0x20] sm:$0xff]
  %v69 = vld [vmem:[%s1 + $0x28] sm:$0xff]
  %v70 = vld [vmem:[%s1 + $0x30] sm:$0xff]
  %v71 = vld [vmem:[%s1 + $0x38] sm:$0xff]
  %v72 = vld [vmem:[%s1 + $0x40] sm:$0xff]
  %v73 = vld [vmem:[%s1 + $0x48] sm:$0xff]
  %v74 = vld [vmem:[%s1 + $0x50] sm:$0xff]
  %v75 = vld [vmem:[%s1 + $0x58] sm:$0xff]
  %v76 = vld [vmem:[%s1 + $0x60] sm:$0xff]
  %v77 = vld [vmem:[%s1 + $0x68] sm:$0xff]
  %v78 = vld [vmem:[%s1 + $0x70] sm:$0xff]
  %v79 = vld [vmem:[%s1 + $0x78] sm:$0xff]
  %v96 = vunpack.c.l.b16 %v48
  %v97 = vunpack.c.h.b16 %v48
  %v98 = vunpack.c.l.b16 %v49
  %v99 = vunpack.c.h.b16 %v49
  %v100 = vunpack.c.l.b16 %v50
  %v101 = vunpack.c.h.b16 %v50
  %v102 = vunpack.c.l.b16 %v51
  %v103 = vunpack.c.h.b16 %v51
  %v104 = vunpack.c.l.b16 %v52
  %v105 = vunpack.c.h.b16 %v52
  %v106 = vunpack.c.l.b16 %v53
  %v107 = vunpack.c.h.b16 %v53
  %v108 = vunpack.c.l.b16 %v54
  %v109 = vunpack.c.h.b16 %v54
  %v110 = vunpack.c.l.b16 %v55
  %v111 = vunpack.c.h.b16 %v55
  %v112 = vunpack.c.l.b16 %v56
  %v113 = vunpack.c.h.b16 %v56
  %v114 = vunpack.c.l.b16 %v57
  %v115 = vunpack.c.h.b16 %v57
  %v116 = vunpack.c.l.b16 %v58
  %v117 = vunpack.c.h.b16 %v58
  %v118 = vunpack.c.l.b16 %v59
  %v119 = vunpack.c.h.b16 %v59
  %v120 = vunpack.c.l.b16 %v60
  %v121 = vunpack.c.h.b16 %v60
  %v122 = vunpack.c.l.b16 %v61
  %v123 = vunpack.c.h.b16 %v61
  %v124 = vunpack.c.l.b16 %v62
  %v125 = vunpack.c.h.b16 %v62
  %v126 = vunpack.c.l.b16 %v63
  %v127 = vunpack.c.h.b16 %v63
  %v128 = vpack.c.b16 %v98, %v96
  %v129 = vpack.c.b16 %v99, %v97
  %v130 = vpack.c.b16 %v102, %v100
  %v131 = vpack.c.b16 %v103, %v101
  %v132 = vpack.c.b16 %v106, %v104
  %v133 = vpack.c.b16 %v107, %v105
  %v134 = vpack.c.b16 %v110, %v108
  %v135 = vpack.c.b16 %v111, %v109
  %v136 = vpack.c.b16 %v114, %v112
  %v137 = vpack.c.b16 %v115, %v113
  %v138 = vpack.c.b16 %v118, %v116
  %v139 = vpack.c.b16 %v119, %v117
  %v140 = vpack.c.b16 %v122, %v120
  %v141 = vpack.c.b16 %v123, %v121
  %v142 = vpack.c.b16 %v126, %v124
  %v143 = vpack.c.b16 %v127, %v125
  %v176 = vunpack.c.l.b16 %v64
  %v177 = vunpack.c.h.b16 %v64
  %v178 = vunpack.c.l.b16 %v65
  %v179 = vunpack.c.h.b16 %v65
  %v180 = vunpack.c.l.b16 %v66
  %v181 = vunpack.c.h.b16 %v66
  %v182 = vunpack.c.l.b16 %v67
  %v183 = vunpack.c.h.b16 %v67
  %v184 = vunpack.c.l.b16 %v68
  %v185 = vunpack.c.h.b16 %v68
  %v186 = vunpack.c.l.b16 %v69
  %v187 = vunpack.c.h.b16 %v69
  %v188 = vunpack.c.l.b16 %v70
  %v189 = vunpack.c.h.b16 %v70
  %v190 = vunpack.c.l.b16 %v71
  %v191 = vunpack.c.h.b16 %v71
  %v192 = vunpack.c.l.b16 %v72
  %v193 = vunpack.c.h.b16 %v72
  %v194 = vunpack.c.l.b16 %v73
  %v195 = vunpack.c.h.b16 %v73
  %v196 = vunpack.c.l.b16 %v74
  %v197 = vunpack.c.h.b16 %v74
  %v198 = vunpack.c.l.b16 %v75
  %v199 = vunpack.c.h.b16 %v75
  %v200 = vunpack.c.l.b16 %v76
  %v201 = vunpack.c.h.b16 %v76
  %v202 = vunpack.c.l.b16 %v77
  %v203 = vunpack.c.h.b16 %v77
  %v204 = vunpack.c.l.b16 %v78
  %v205 = vunpack.c.h.b16 %v78
  %v206 = vunpack.c.l.b16 %v79
  %v207 = vunpack.c.h.b16 %v79
  %v208 = vpack.c.b16 %v178, %v176
  %v209 = vpack.c.b16 %v179, %v177
  %v210 = vpack.c.b16 %v182, %v180
  %v211 = vpack.c.b16 %v183, %v181
  %v212 = vpack.c.b16 %v186, %v184
  %v213 = vpack.c.b16 %v187, %v185
  %v214 = vpack.c.b16 %v190, %v188
  %v215 = vpack.c.b16 %v191, %v189
  %v216 = vpack.c.b16 %v194, %v192
  %v217 = vpack.c.b16 %v195, %v193
  %v218 = vpack.c.b16 %v198, %v196
  %v219 = vpack.c.b16 %v199, %v197
  %v220 = vpack.c.b16 %v202, %v200
  %v221 = vpack.c.b16 %v203, %v201
  %v222 = vpack.c.b16 %v206, %v204
  %v223 = vpack.c.b16 %v207, %v205
  %240 = vmatprep.subr.bf16.mxu0 %v223
  %241 = vmatpush1.bf16.xpose.msra.mxu0 %v222
  %242 = vmatprep.subr.bf16.mxu0 %v221
  %243 = vmatpush1.bf16.xpose.msra.mxu0 %v220
  %244 = vmatprep.subr.bf16.mxu0 %v219
  %245 = vmatpush1.bf16.xpose.msra.mxu0 %v218
  %246 = vmatprep.subr.bf16.mxu0 %v217
  %247 = vmatpush1.bf16.xpose.msra.mxu0 %v216
  %248 = vmatprep.subr.bf16.mxu0 %v215
  %249 = vmatpush1.bf16.xpose.msra.mxu0 %v214
  %250 = vmatprep.subr.bf16.mxu0 %v213
  %251 = vmatpush1.bf16.xpose.msra.mxu0 %v212
  %252 = vmatprep.subr.bf16.mxu0 %v211
  %253 = vmatpush1.bf16.xpose.msra.mxu0 %v210
  %254 = vmatprep.subr.bf16.mxu0 %v209
  %255 = vmatpush1.bf16.xpose.msra.mxu0 %v208
  %256 = vmatprep.subr.bf16.mxu0 0
  %257 = vmatpush2.bf16.xpose.msra.mxu0 0
  %258 = vmatprep.subr.bf16.mxu0 0
  %259 = vmatpush2.bf16.xpose.msra.mxu0 0
  %260 = vmatprep.subr.bf16.mxu0 0
  %261 = vmatpush2.bf16.xpose.msra.mxu0 0
  %262 = vmatprep.subr.bf16.mxu0 0
  %263 = vmatpush2.bf16.xpose.msra.mxu0 0
  %264 = vmatprep.subr.bf16.mxu0 0
  %265 = vmatpush2.bf16.xpose.msra.mxu0 0
  %266 = vmatprep.subr.bf16.mxu0 0
  %267 = vmatpush2.bf16.xpose.msra.mxu0 0
  %268 = vmatprep.subr.bf16.mxu0 0
  %269 = vmatpush2.bf16.xpose.msra.mxu0 0
  %270 = vmatprep.subr.bf16.mxu0 0
  %271 = vmatpush2.bf16.xpose.msra.mxu0 0
  %272 = vmatprep.mubr.bf16.mxu0 %v129
  %273 = vmatmul.mubr.bf16.gmra.mxu0 %v128
  %v274 = vpop.f32.mrf.mxu0
  %v275 = vadd.f32 0.0, %v274
  %v276 = vpop.f32.mrf.mxu0
  %v277 = vpop.f32.mrf.mxu0
  %v278 = vadd.f32 0.0, %v277
  %v279 = vpop.f32.mrf.mxu0
  %280 = vmatprep.mubr.bf16.mxu0 %v131
  %281 = vmatmul.mubr.bf16.gmra.mxu0 %v130
  %v282 = vpop.f32.mrf.mxu0
  %v283 = vadd.f32 0.0, %v282
  %v284 = vpop.f32.mrf.mxu0
  %v285 = vpop.f32.mrf.mxu0
  %v286 = vadd.f32 0.0, %v285
  %v287 = vpop.f32.mrf.mxu0
  %288 = vmatprep.mubr.bf16.mxu0 %v133
  %289 = vmatmul.mubr.bf16.gmra.mxu0 %v132
  %v290 = vpop.f32.mrf.mxu0
  %v291 = vadd.f32 0.0, %v290
  %v292 = vpop.f32.mrf.mxu0
  %v293 = vpop.f32.mrf.mxu0
  %v294 = vadd.f32 0.0, %v293
  %v295 = vpop.f32.mrf.mxu0
  %296 = vmatprep.mubr.bf16.mxu0 %v135
  %297 = vmatmul.mubr.bf16.gmra.mxu0 %v134
  %v298 = vpop.f32.mrf.mxu0
  %v299 = vadd.f32 0.0, %v298
  %v300 = vpop.f32.mrf.mxu0
  %v301 = vpop.f32.mrf.mxu0
  %v302 = vadd.f32 0.0, %v301
  %v303 = vpop.f32.mrf.mxu0
  %304 = vmatprep.mubr.bf16.mxu0 %v137
  %305 = vmatmul.mubr.bf16.gmra.mxu0 %v136
  %v306 = vpop.f32.mrf.mxu0
  %v307 = vadd.f32 0.0, %v306
  %v308 = vpop.f32.mrf.mxu0
  %v309 = vpop.f32.mrf.mxu0
  %v310 = vadd.f32 0.0, %v309
  %v311 = vpop.f32.mrf.mxu0
  %312 = vmatprep.mubr.bf16.mxu0 %v139
  %313 = vmatmul.mubr.bf16.gmra.mxu0 %v138
  %v314 = vpop.f32.mrf.mxu0
  %v315 = vadd.f32 0.0, %v314
  %v316 = vpop.f32.mrf.mxu0
  %v317 = vpop.f32.mrf.mxu0
  %v318 = vadd.f32 0.0, %v317
  %v319 = vpop.f32.mrf.mxu0
  %320 = vmatprep.mubr.bf16.mxu0 %v141
  %321 = vmatmul.mubr.bf16.gmra.mxu0 %v140
  %v322 = vpop.f32.mrf.mxu0
  %v323 = vadd.f32 0.0, %v322
  %v324 = vpop.f32.mrf.mxu0
  %v325 = vpop.f32.mrf.mxu0
  %v326 = vadd.f32 0.0, %v325
  %v327 = vpop.f32.mrf.mxu0
  %328 = vmatprep.mubr.bf16.mxu0 %v143
  %329 = vmatmul.mubr.bf16.gmra.mxu0 %v142
  %v330 = vpop.f32.mrf.mxu0
  %v331 = vadd.f32 0.0, %v330
  %v332 = vpop.f32.mrf.mxu0
  %v333 = vpop.f32.mrf.mxu0
  %v334 = vadd.f32 0.0, %v333
  %v335 = vpop.f32.mrf.mxu0
  %336 = vdwg.mxu0
  %v337 = vadd.f32 %v32, %v275
  %v338 = vadd.f32 %v33, %v278
  %v339 = vadd.f32 %v34, %v283
  %v340 = vadd.f32 %v35, %v286
  %v341 = vadd.f32 %v36, %v291
  %v342 = vadd.f32 %v37, %v294
  %v343 = vadd.f32 %v38, %v299
  %v344 = vadd.f32 %v39, %v302
  %v345 = vadd.f32 %v40, %v307
  %v346 = vadd.f32 %v41, %v310
  %v347 = vadd.f32 %v42, %v315
  %v348 = vadd.f32 %v43, %v318
  %v349 = vadd.f32 %v44, %v323
  %v350 = vadd.f32 %v45, %v326
  %v351 = vadd.f32 %v46, %v331
  %v352 = vadd.f32 %v47, %v334
  %353 = vst [vmem:[%s2] sm:$0xff] %v337
  %354 = vst [vmem:[%s2 + $0x8] sm:$0xff] %v338
  %355 = vst [vmem:[%s2 + $0x10] sm:$0xff] %v339
  %356 = vst [vmem:[%s2 + $0x18] sm:$0xff] %v340
  %357 = vst [vmem:[%s2 + $0x20] sm:$0xff] %v341
  %358 = vst [vmem:[%s2 + $0x28] sm:$0xff] %v342
  %359 = vst [vmem:[%s2 + $0x30] sm:$0xff] %v343
  %360 = vst [vmem:[%s2 + $0x38] sm:$0xff] %v344
  %361 = vst [vmem:[%s2 + $0x40] sm:$0xff] %v345
  %362 = vst [vmem:[%s2 + $0x48] sm:$0xff] %v346
  %363 = vst [vmem:[%s2 + $0x50] sm:$0xff] %v347
  %364 = vst [vmem:[%s2 + $0x58] sm:$0xff] %v348
  %365 = vst [vmem:[%s2 + $0x60] sm:$0xff] %v349
  %366 = vst [vmem:[%s2 + $0x68] sm:$0xff] %v350
  %367 = vst [vmem:[%s2 + $0x70] sm:$0xff] %v351
  %368 = vst [vmem:[%s2 + $0x78] sm:$0xff] %v352
  // Predicated region
  $region14: #{tensor_dot.1} parent=0 // pred_check
    _
  $region15: #{tensor_dot.1} parent=0 // pred_check_branch
    %370 = sbr.rel (0) target = $region17
  $region16: #{tensor_dot.1} parent=0 // pred_region
    _
  $region17: #{tensor_dot.1} parent=0 // pred_fallthru
    _
  // Predicated region
  $region18: #{tensor_dot.1} parent=0 // pred_check
    _
  $region19: #{tensor_dot.1} parent=0 // pred_check_branch
    %372 = sbr.rel (0) target = $region21
  $region20: #{tensor_dot.1} parent=0 // pred_region
    _
  $region21: #{tensor_dot.1} parent=0 // pred_fallthru
    _

</llo_original>
